<compile_context>
chip_gen: v5e
topology: v5e:2x2
jax: 0.10.0
libtpu: 0.0.40
codegen_flags: <defaults>
</compile_context>

<pallas_src>
import functools
import numpy as np
import jax
import jax.numpy as jnp
from jax import lax
from jax.experimental import pallas as pl
from jax.experimental.pallas import tpu as pltpu


# ----------------------------------------------------------------------------
# Pass 1: wide QKV projection (computed once, reused by every query tile)
# ----------------------------------------------------------------------------
def _qkv_proj_kernel(hq, hk, x_ref, w_ref, b_ref, q_ref, k_ref, v_ref):
    proj = jnp.dot(x_ref[...], w_ref[...],
                   preferred_element_type=jnp.float32) + b_ref[...]
    q_ref[...] = proj[:, :hq].astype(jnp.bfloat16)
    k_ref[...] = proj[:, hq:hq + hk].astype(jnp.bfloat16)
    v_ref[...] = proj[:, hq + hk:hq + 2 * hk].astype(jnp.bfloat16)


# ----------------------------------------------------------------------------
# Pass 2: per-query-tile attention + fused output Linear
# ----------------------------------------------------------------------------
def _attn_kernel(num_heads, dim_q, dim_k, scale,
                 q_ref, k_ref, v_ref, b_ref, c_ref, segr_ref, segc_ref,
                 wo_ref, bo_ref, out_ref):
    tq = q_ref.shape[0]
    n = k_ref.shape[0]
    dim_in = out_ref.shape[1]

    # Block-diagonal (per-graph) structure from int32 segment ids -> boolean mask only.
    seg_r = jnp.broadcast_to(segr_ref[...], (tq, n))     # (1, N)  -> (TQ, N)
    seg_c = jnp.broadcast_to(segc_ref[...], (tq, n))     # (TQ, 1) -> (TQ, N)
    inside = seg_c == seg_r

    q_all = q_ref[...]                                   # (TQ, H*dim_q) bf16
    k_all = k_ref[...]                                   # (N,  H*dim_k) bf16
    v_all = v_ref[...]                                   # (N,  H*dim_k) bf16
    b_f32 = b_ref[...].astype(jnp.float32)               # (TQ, N)

    acc = jnp.zeros((tq, dim_in), dtype=jnp.float32)
    for h in range(num_heads):                           # static unrolled head loop
        q_h = q_all[:, h * dim_q:(h + 1) * dim_q]
        k_h = k_all[:, h * dim_k:(h + 1) * dim_k]
        v_h = v_all[:, h * dim_k:(h + 1) * dim_k]

        # Scaled scores (MXU, bf16 operands, f32 accumulate), no explicit k.T relayout.
        a = lax.dot_general(q_h, k_h, (((1,), (1,)), ((), ())),
                            preferred_element_type=jnp.float32) * scale
        bias = b_f32 + c_ref[h].astype(jnp.float32)

        # Reference semantics:  inside -> a + b + c ; outside -> -1e6 * (b + c)
        s = jnp.where(inside, a + bias, -1000000.0 * bias)

        # softmax(dim=-1) then post-softmax zeroing (faithful to the module).
        m = jnp.max(s, axis=-1, keepdims=True)
        e = jnp.exp(s - m)
        denom = jnp.sum(e, axis=-1, keepdims=True)
        p = e * pl.reciprocal(denom, approx=True)
        p = jnp.where(inside, p, 0.0)

        # Head output folded straight into the fused output Linear (lane-dense acc).
        pv = jnp.dot(p.astype(jnp.bfloat16), v_h,
                     preferred_element_type=jnp.float32)          # (TQ, dim_k)
        acc = acc + jnp.dot(pv.astype(jnp.bfloat16), wo_ref[h],
                            preferred_element_type=jnp.float32)   # (TQ, dim_in)

    out_ref[...] = acc + bo_ref[...]


# ----------------------------------------------------------------------------
# Wrapper
# ----------------------------------------------------------------------------
def graphormer_mha(x, b_spatial, c_edge, seg_ids, params, *, tq=None):
    """x: (N, dim_in); b_spatial: (N, N); c_edge: (H, N, N); seg_ids: (N,) int32."""
    N, dim_in = x.shape
    H, _, dim_q = params["wq"].shape
    dim_k = params["wk"].shape[-1]
    scale = 1.0 / float(dim_q) ** 0.5
    hq, hk = H * dim_q, H * dim_k
    d_tot = hq + 2 * hk

    if tq is None:
        tq = N
    assert N % tq == 0 and (tq == N or tq % 16 == 0), "tq must divide N (mult of 16)"
    n_tiles = N // tq

    # Group-contiguous [Q heads | K heads | V heads] stacked weights (bf16 MXU operands).
    wq_s = jnp.transpose(params["wq"], (1, 0, 2)).reshape(dim_in, hq)
    wk_s = jnp.transpose(params["wk"], (1, 0, 2)).reshape(dim_in, hk)
    wv_s = jnp.transpose(params["wv"], (1, 0, 2)).reshape(dim_in, hk)
    w_qkv = jnp.concatenate([wq_s, wk_s, wv_s], axis=-1).astype(jnp.bfloat16)
    bq_s = jnp.transpose(params["bq"], (1, 0, 2)).reshape(1, hq)
    bk_s = jnp.transpose(params["bk"], (1, 0, 2)).reshape(1, hk)
    bv_s = jnp.transpose(params["bv"], (1, 0, 2)).reshape(1, hk)
    b_qkv = jnp.concatenate([bq_s, bk_s, bv_s], axis=-1).astype(jnp.float32)

    x_b = x.astype(jnp.bfloat16)

    # ---- Pass 1: QKV projection (once) ------------------------------------
    q_all, k_all, v_all = pl.pallas_call(
        functools.partial(_qkv_proj_kernel, hq, hk),
        out_shape=(jax.ShapeDtypeStruct((N, hq), jnp.bfloat16),
                   jax.ShapeDtypeStruct((N, hk), jnp.bfloat16),
                   jax.ShapeDtypeStruct((N, hk), jnp.bfloat16)),
        grid=(1,),
        in_specs=[
            pl.BlockSpec((N, dim_in), lambda i: (0, 0)),
            pl.BlockSpec((dim_in, d_tot), lambda i: (0, 0)),
            pl.BlockSpec((1, d_tot), lambda i: (0, 0)),
        ],
        out_specs=(pl.BlockSpec((N, hq), lambda i: (0, 0)),
                   pl.BlockSpec((N, hk), lambda i: (0, 0)),
                   pl.BlockSpec((N, hk), lambda i: (0, 0))),
        compiler_params=pltpu.CompilerParams(
            dimension_semantics=("arbitrary",),
            vmem_limit_bytes=48 * 1024 * 1024),
    )(x_b, w_qkv, b_qkv)

    # ---- Pass 2: attention tiled over query rows ---------------------------
    seg_row = seg_ids.astype(jnp.int32).reshape(1, N)
    seg_col = seg_ids.astype(jnp.int32).reshape(N, 1)
    wo = params["wo"].reshape(H, dim_k, dim_in).astype(jnp.bfloat16)
    bo = params["bo"].astype(jnp.float32)
    b_bf = b_spatial.astype(jnp.bfloat16)      # heavy streams carried in bf16
    c_bf = c_edge.astype(jnp.bfloat16)

    out = pl.pallas_call(
        functools.partial(_attn_kernel, H, dim_q, dim_k, scale),
        out_shape=jax.ShapeDtypeStruct((N, dim_in), jnp.float32),
        grid=(n_tiles,),
        in_specs=[
            pl.BlockSpec((tq, hq), lambda i: (i, 0)),              # Q tile
            pl.BlockSpec((N, hk), lambda i: (0, 0)),               # K (full, reused)
            pl.BlockSpec((N, hk), lambda i: (0, 0)),               # V (full, reused)
            pl.BlockSpec((tq, N), lambda i: (i, 0)),               # b spatial tile
            pl.BlockSpec((H, tq, N), lambda i: (0, i, 0)),         # c edge tile (per head)
            pl.BlockSpec((1, N), lambda i: (0, 0)),                # segment ids (row)
            pl.BlockSpec((tq, 1), lambda i: (i, 0)),               # segment ids (col)
            pl.BlockSpec((H, dim_k, dim_in), lambda i: (0, 0, 0)), # Wo (per head slabs)
            pl.BlockSpec((1, dim_in), lambda i: (0, 0)),           # bo
        ],
        out_specs=pl.BlockSpec((tq, dim_in), lambda i: (i, 0)),
        compiler_params=pltpu.CompilerParams(
            dimension_semantics=("parallel",),                      # megacore on v7x
            vmem_limit_bytes=48 * 1024 * 1024),
    )(q_all, k_all, v_all, b_bf, c_bf, seg_row, seg_col, wo, bo)
    return out


# ----------------------------------------------------------------------------
# Glue: EdgeEncoding, segment ids, batch masks (data-dependent / ragged -> Python)
# ----------------------------------------------------------------------------
def compute_edge_encoding(edge_vector, edge_attr, edge_paths, n_nodes, max_path_distance):
    ev = np.asarray(edge_vector)
    ea = np.asarray(edge_attr)
    c = np.zeros((n_nodes, n_nodes), dtype=np.float32)
    for src in edge_paths:
        for dst in edge_paths[src]:
            path = edge_paths[src][dst][:max_path_distance]
            if len(path) == 0:
                c[src, dst] = 0.0  # mean of empty -> nan -> nan_to_num -> 0
                continue
            w = ev[: len(path)]
            e = ea[np.asarray(path)]
            c[src, dst] = float((w * e).sum(axis=1).mean())
    return np.nan_to_num(c).astype(np.float32)


def build_segment_ids(n_nodes, ptr):
    """ptr=None => single segment (module's 'all ones masks / full compute_a' path)."""
    seg = np.zeros((n_nodes,), dtype=np.int32)
    if ptr is None:
        return seg
    for i in range(len(ptr) - 1):
        seg[ptr[i]:ptr[i + 1]] = i
    return seg


def build_batch_masks(n_nodes, ptr):
    """Reference-side masks (only used by the numpy check)."""
    a_mask = np.zeros((n_nodes, n_nodes), dtype=np.float32)
    mneg = np.full((n_nodes, n_nodes), -1000000.0, dtype=np.float32)
    mzero = np.zeros((n_nodes, n_nodes), dtype=np.float32)
    if ptr is None:
        return np.ones_like(a_mask), np.ones_like(mneg), np.ones_like(mzero)
    for i in range(len(ptr) - 1):
        s, e = ptr[i], ptr[i + 1]
        a_mask[s:e, s:e] = 1.0
        mneg[s:e, s:e] = 1.0
        mzero[s:e, s:e] = 1.0
    return a_mask, mneg, mzero


def _q16(a):
    """Round-trip through bf16 (mirrors the kernel's bf16 storage of that quantity)."""
    return np.asarray(jnp.asarray(np.asarray(a)).astype(jnp.bfloat16)
                      .astype(jnp.float32))


def reference_numpy(x, params, b_spatial, c_edge, a_mask, mneg, mzero):
    """Module-faithful numpy reference, evaluated at the kernel's bf16 storage points."""
    x = _q16(x)
    H, _, dim_q = params["wq"].shape
    scale = 1.0 / np.sqrt(dim_q)
    b = _q16(b_spatial)
    c = _q16(c_edge)
    heads = []
    for h in range(H):
        q = _q16(x @ _q16(params["wq"][h]) + np.asarray(params["bq"][h]))
        k = _q16(x @ _q16(params["wk"][h]) + np.asarray(params["bk"][h]))
        v = _q16(x @ _q16(params["wv"][h]) + np.asarray(params["bv"][h]))
        a = (q @ k.T) * scale * a_mask
        s = (a + b + c[h]) * mneg
        e = np.exp(s - s.max(axis=-1, keepdims=True))
        p = e / e.sum(axis=-1, keepdims=True)
        p = p * mzero
        heads.append(p @ v)
    xc = np.concatenate(heads, axis=-1)
    return xc @ _q16(params["wo"]) + np.asarray(params["bo"])


# ----------------------------------------------------------------------------
# Main
# ----------------------------------------------------------------------------
if __name__ == "__main__":
    # Small, module-consistent shapes
    num_heads, dim_in, dim_q, dim_k = 2, 16, 8, 8
    edge_dim, max_path_distance = 4, 5
    n_nodes, n_edges = 32, 24
    ptr = [0, 16, 32]        # two graphs of 16 nodes in the batch
    tq = 16                  # query-row tile -> grid of 2 "parallel" tiles

    key = jax.random.PRNGKey(0)
    keys = jax.random.split(key, 12)
    x = jax.random.normal(keys[0], (n_nodes, dim_in), dtype=jnp.float32)
    edge_attr = jax.random.normal(keys[1], (n_edges, edge_dim), dtype=jnp.float32)
    # Non-negative spatial bias keeps the block-masked softmax path non-degenerate.
    b_spatial = jnp.abs(jax.random.normal(keys[2], (n_nodes, n_nodes),
                                          dtype=jnp.float32)) * 0.1

    params = {
        "wq": jax.random.normal(keys[3], (num_heads, dim_in, dim_q), dtype=jnp.float32) * 0.2,
        "bq": jax.random.normal(keys[4], (num_heads, 1, dim_q), dtype=jnp.float32) * 0.1,
        "wk": jax.random.normal(keys[5], (num_heads, dim_in, dim_k), dtype=jnp.float32) * 0.2,
        "bk": jax.random.normal(keys[6], (num_heads, 1, dim_k), dtype=jnp.float32) * 0.1,
        "wv": jax.random.normal(keys[7], (num_heads, dim_in, dim_k), dtype=jnp.float32) * 0.2,
        "bv": jax.random.normal(keys[8], (num_heads, 1, dim_k), dtype=jnp.float32) * 0.1,
        "wo": jax.random.normal(keys[9], (num_heads * dim_k, dim_in), dtype=jnp.float32) * 0.2,
        "bo": jax.random.normal(keys[10], (1, dim_in), dtype=jnp.float32) * 0.1,
        # one EdgeEncoding per head
        "edge_vec": jax.random.normal(keys[11], (num_heads, max_path_distance, edge_dim),
                                      dtype=jnp.float32),
    }

    # Deterministic synthetic edge_paths: dict[src][dst] -> list of edge indices
    rng = np.random.default_rng(0)
    edge_paths = {}
    for src in range(n_nodes):
        edge_paths[src] = {}
        for dst in range(n_nodes):
            if src // 16 != dst // 16:
                continue  # only intra-graph paths
            plen = int(rng.integers(1, max_path_distance + 2))  # occasionally > max, truncated
            edge_paths[src][dst] = [int(e) for e in rng.integers(0, n_edges, size=plen)]

    # Per-head edge encoding matrices (host-side glue), stacked to (H, N, N)
    c_edge_np = np.stack(
        [compute_edge_encoding(params["edge_vec"][h], edge_attr, edge_paths,
                               n_nodes, max_path_distance)
         for h in range(num_heads)], axis=0)
    c_edge = jnp.asarray(c_edge_np)

    seg_ids = jnp.asarray(build_segment_ids(n_nodes, ptr))

    out = graphormer_mha(x, b_spatial, c_edge, seg_ids, params, tq=tq)
    out = jax.block_until_ready(out)

    a_mask_np, mneg_np, mzero_np = build_batch_masks(n_nodes, ptr)
    ref = reference_numpy(x, params, np.asarray(b_spatial), c_edge_np,
                          a_mask_np, mneg_np, mzero_np)
    # Tolerance covers the kernel's bf16 matmul operands (f32 accumulation) and the
    # EUP approximate reciprocal on the softmax denominator.
    np.testing.assert_allclose(np.asarray(out), ref, rtol=1e-2, atol=1e-2)

    print("KERNEL_OK")
</pallas_src>

<mosaic_0001>
module attributes {stable_mosaic.version = 11 : i64} {
  func.func @_qkv_proj_kernel(%arg0: i32, %arg1: memref<32x16xbf16, #tpu.memory_space<vmem>>, %arg2: memref<16x48xbf16, #tpu.memory_space<vmem>>, %arg3: memref<1x48xf32, #tpu.memory_space<vmem>>, %arg4: memref<32x16xbf16, #tpu.memory_space<vmem>>, %arg5: memref<32x16xbf16, #tpu.memory_space<vmem>>, %arg6: memref<32x16xbf16, #tpu.memory_space<vmem>>) attributes {dimension_semantics = [#tpu.dimension_semantics<arbitrary>], iteration_bounds = array<i64: 1>, scalar_prefetch = 0 : i64, scratch_operands = 0 : i64, tpu.core_type = #tpu.core_type<tc>, window_params = [{pipeline_mode = #tpu.pipeline_mode<synchronous>, transform_indices = @transform_0, window_bounds = array<i64: 32, 16>}, {pipeline_mode = #tpu.pipeline_mode<synchronous>, transform_indices = @transform_1, window_bounds = array<i64: 16, 48>}, {pipeline_mode = #tpu.pipeline_mode<synchronous>, transform_indices = @transform_2, window_bounds = array<i64: 1, 48>}, {pipeline_mode = #tpu.pipeline_mode<synchronous>, transform_indices = @transform_3, window_bounds = array<i64: 32, 16>}, {pipeline_mode = #tpu.pipeline_mode<synchronous>, transform_indices = @transform_4, window_bounds = array<i64: 32, 16>}, {pipeline_mode = #tpu.pipeline_mode<synchronous>, transform_indices = @transform_5, window_bounds = array<i64: 32, 16>}]} {
    %c0 = arith.constant 0 : index
    %c0_0 = arith.constant 0 : index
    %0 = vector.load %arg1[%c0, %c0_0] : memref<32x16xbf16, #tpu.memory_space<vmem>>, vector<32x16xbf16>
    %c0_1 = arith.constant 0 : index
    %c0_2 = arith.constant 0 : index
    %1 = vector.load %arg2[%c0_1, %c0_2] : memref<16x48xbf16, #tpu.memory_space<vmem>>, vector<16x48xbf16>
    %cst = arith.constant dense<0.000000e+00> : vector<32x48xf32>
    %2 = tpu.matmul %0, %1, %cst {dimension_numbers = #tpu.dot_dimension_numbers<[1], [0], [0], [1], [0, 0, 1, 1], [], []>} : vector<32x16xbf16>, vector<16x48xbf16>, vector<32x48xf32> -> vector<32x48xf32>
    %c0_3 = arith.constant 0 : index
    %c0_4 = arith.constant 0 : index
    %3 = vector.load %arg3[%c0_3, %c0_4] : memref<1x48xf32, #tpu.memory_space<vmem>>, vector<1x48xf32>
    %4 = vector.broadcast %3 : vector<1x48xf32> to vector<32x48xf32>
    %5 = arith.addf %2, %4 : vector<32x48xf32>
    %6 = vector.extract_strided_slice %5 {offsets = [0, 0], sizes = [32, 16], strides = [1, 1]} : vector<32x48xf32> to vector<32x16xf32>
    %7 = arith.truncf %6 : vector<32x16xf32> to vector<32x16xbf16>
    %c0_5 = arith.constant 0 : index
    %c0_6 = arith.constant 0 : index
    %8 = vector.load %arg4[%c0_5, %c0_6] : memref<32x16xbf16, #tpu.memory_space<vmem>>, vector<32x16xbf16>
    tpu.vector_store %arg4[%c0_5, %c0_6], %7 {strides = array<i32>} : memref<32x16xbf16, #tpu.memory_space<vmem>>, vector<32x16xbf16>,
    %9 = vector.extract_strided_slice %5 {offsets = [0, 16], sizes = [32, 16], strides = [1, 1]} : vector<32x48xf32> to vector<32x16xf32>
    %10 = arith.truncf %9 : vector<32x16xf32> to vector<32x16xbf16>
    %c0_7 = arith.constant 0 : index
    %c0_8 = arith.constant 0 : index
    %11 = vector.load %arg5[%c0_7, %c0_8] : memref<32x16xbf16, #tpu.memory_space<vmem>>, vector<32x16xbf16>
    tpu.vector_store %arg5[%c0_7, %c0_8], %10 {strides = array<i32>} : memref<32x16xbf16, #tpu.memory_space<vmem>>, vector<32x16xbf16>,
    %12 = vector.extract_strided_slice %5 {offsets = [0, 32], sizes = [32, 16], strides = [1, 1]} : vector<32x48xf32> to vector<32x16xf32>
    %13 = arith.truncf %12 : vector<32x16xf32> to vector<32x16xbf16>
    %c0_9 = arith.constant 0 : index
    %c0_10 = arith.constant 0 : index
    %14 = vector.load %arg6[%c0_9, %c0_10] : memref<32x16xbf16, #tpu.memory_space<vmem>>, vector<32x16xbf16>
    tpu.vector_store %arg6[%c0_9, %c0_10], %13 {strides = array<i32>} : memref<32x16xbf16, #tpu.memory_space<vmem>>, vector<32x16xbf16>,
    return
  }
  func.func @transform_0(%arg0: i32) -> (i32, i32) {
    %c0_i32 = arith.constant 0 : i32
    %c0_i32_0 = arith.constant 0 : i32
    %c0_i32_1 = arith.constant 0 : i32
    return %c0_i32, %c0_i32_0 : i32, i32
  }
  func.func @transform_1(%arg0: i32) -> (i32, i32) {
    %c0_i32 = arith.constant 0 : i32
    %c0_i32_0 = arith.constant 0 : i32
    %c0_i32_1 = arith.constant 0 : i32
    return %c0_i32, %c0_i32_0 : i32, i32
  }
  func.func @transform_2(%arg0: i32) -> (i32, i32) {
    %c0_i32 = arith.constant 0 : i32
    %c0_i32_0 = arith.constant 0 : i32
    %c0_i32_1 = arith.constant 0 : i32
    return %c0_i32, %c0_i32_0 : i32, i32
  }
  func.func @transform_3(%arg0: i32) -> (i32, i32) {
    %c0_i32 = arith.constant 0 : i32
    %c0_i32_0 = arith.constant 0 : i32
    %c0_i32_1 = arith.constant 0 : i32
    return %c0_i32, %c0_i32_0 : i32, i32
  }
  func.func @transform_4(%arg0: i32) -> (i32, i32) {
    %c0_i32 = arith.constant 0 : i32
    %c0_i32_0 = arith.constant 0 : i32
    %c0_i32_1 = arith.constant 0 : i32
    return %c0_i32, %c0_i32_0 : i32, i32
  }
  func.func @transform_5(%arg0: i32) -> (i32, i32) {
    %c0_i32 = arith.constant 0 : i32
    %c0_i32_0 = arith.constant 0 : i32
    %c0_i32_1 = arith.constant 0 : i32
    return %c0_i32, %c0_i32_0 : i32, i32
  }
}

</mosaic_0001>

<llo_original>
// kernel: tpu_custom_call.1
$region0: #{tpu_custom_call.1}
  #allocation0 [shape = 'u32[]', space=smem, size = 0x4, offset = 0x4, fixed_abs, tag = 'smem constant byte address 0x4 - core index']
  #allocation1 [shape = 'u32[72,128]{1,0:T(1,128)}', space=vmem, size = 0x9000, scoped, tag = 'internal scratch']
  %s0 = inlined_call_operand.vmem [shape: bf16[32,16], index: 0, kind: input, shape index: {}]
  %s1 = inlined_call_operand.vmem [shape: bf16[16,48], index: 1, kind: input, shape index: {}]
  %s2 = inlined_call_operand.vmem [shape: f32[1,48], index: 2, kind: input, shape index: {}]
  %s3 = inlined_call_operand.vmem [shape: bf16[32,16], index: 3, kind: output, shape index: {0}]
  %s4 = inlined_call_operand.vmem [shape: bf16[32,16], index: 4, kind: output, shape index: {1}]
  %s5 = inlined_call_operand.vmem [shape: bf16[32,16], index: 5, kind: output, shape index: {2}]
  %6 = xla_tuple %s3, %s4, %s5
  %s7 = sld [smem:[#allocation0]]
  $region38: #{tpu_custom_call.1} parent=0
    _
  %s9 = ssub.s32 1, %s7
  %s10 = scalar_select 0, %s9, %s7
  // Predicated region
  $region2: #{tpu_custom_call.1} parent=0 // pred_check
    _
  $region3: #{tpu_custom_call.1} parent=0 // pred_check_branch
    %12 = sbr.rel (0) target = $region5
  $region4: #{tpu_custom_call.1} parent=0 // pred_region
    _
  $region5: #{tpu_custom_call.1} parent=0 // pred_fallthru
    _
  // Predicated region
  $region6: #{tpu_custom_call.1} parent=0 // pred_check
    _
  $region7: #{tpu_custom_call.1} parent=0 // pred_check_branch
    %14 = sbr.rel (0) target = $region9
  $region8: #{tpu_custom_call.1} parent=0 // pred_region
    _
  $region9: #{tpu_custom_call.1} parent=0 // pred_fallthru
    _
  // Predicated region
  $region10: #{tpu_custom_call.1} parent=0 // pred_check
    _
  $region11: #{tpu_custom_call.1} parent=0 // pred_check_branch
    %16 = sbr.rel (0) target = $region13
  $region12: #{tpu_custom_call.1} parent=0 // pred_region
    _
  $region13: #{tpu_custom_call.1} parent=0 // pred_fallthru
    _
  %v18 = vld [vmem:[%s0] sm:$0xf]
  %v19 = vld [vmem:[%s0 + $0x4] sm:$0xf]
  %v20 = vld [vmem:[%s0 + $0x8] sm:$0xf]
  %v21 = vld [vmem:[%s0 + $0xc] sm:$0xf]
  %v22 = vld [vmem:[%s1] sm:$0xf]
  %v23 = vld [vmem:[%s1 + $0x4] sm:$0xf]
  %v24 = vld [vmem:[%s2] sm:$0x1]
  %v26 = vperm.slane %v24, 0
  %v32 = vunpack.c.l.b16 %v18
  %v33 = vunpack.c.l.b16 %v19
  %v34 = vunpack.c.l.b16 %v20
  %v35 = vunpack.c.l.b16 %v21
  %v36 = vpack.c.b16 %v33, %v32
  %v37 = vpack.c.b16 %v35, %v34
  %v40 = vunpack.c.l.b16 %v22
  %v41 = vunpack.c.l.b16 %v23
  %v42 = vpack.c.b16 %v41, %v40
  %vm44 = vcmask 130048
  %v46 = vsel %vm44, %v36, 0
  %v49 = vsel %vm44, %v37, 0
  %51 = vmatpush.bf16.msra.mxu0 0
  %52 = vmatpush.bf16.msra.mxu0 0
  %53 = vmatpush.bf16.msra.mxu0 0
  %54 = vmatpush.bf16.msra.mxu0 0
  %55 = vmatpush.bf16.msra.mxu0 0
  %56 = vmatpush.bf16.msra.mxu0 0
  %57 = vmatpush.bf16.msra.mxu0 0
  %58 = vmatpush.bf16.msra.mxu0 %v42
  %59 = vmatmul.bf16.gmra.mxu0 %v46
  %v60 = vpop.f32.mrf.mxu0
  %v61 = vadd.f32 %v26, %v60
  %v62 = vpop.f32.mrf.mxu0
  %v63 = vadd.f32 %v26, %v62
  %64 = vmatmul.bf16.gmra.mxu0 %v49
  %v65 = vpop.f32.mrf.mxu0
  %v66 = vadd.f32 %v26, %v65
  %v67 = vpop.f32.mrf.mxu0
  %v68 = vadd.f32 %v26, %v67
  %69 = vdwg.mxu0
  %v70 = vpack.c.bf16 %v61, %v61
  %v71 = vpack.c.bf16 %v63, %v63
  %v72 = vpack.c.bf16 %v66, %v66
  %v73 = vpack.c.bf16 %v68, %v68
  %vm74 = vcmask 125952
  %75 = vst.msk [vmem:[%s3] sm:$0xf] %vm74, %v70
  %76 = vst.msk [vmem:[%s3 + $0x4] sm:$0xf] %vm74, %v71
  %77 = vst.msk [vmem:[%s3 + $0x8] sm:$0xf] %vm74, %v72
  %78 = vst.msk [vmem:[%s3 + $0xc] sm:$0xf] %vm74, %v73
  %83 = vrot.lane.b32.xlu0 %v70, 112
  %v84 = vpop.permute.xlu0 %83
  %85 = vrot.lane.b32.xlu0 %v71, 112
  %v86 = vpop.permute.xlu0 %85
  %87 = vrot.lane.b32.xlu0 %v72, 112
  %v88 = vpop.permute.xlu0 %87
  %89 = vrot.lane.b32.xlu0 %v73, 112
  %v90 = vpop.permute.xlu0 %89
  %95 = vst.msk [vmem:[%s4] sm:$0xf] %vm74, %v84
  %96 = vst.msk [vmem:[%s4 + $0x4] sm:$0xf] %vm74, %v86
  %97 = vst.msk [vmem:[%s4 + $0x8] sm:$0xf] %vm74, %v88
  %98 = vst.msk [vmem:[%s4 + $0xc] sm:$0xf] %vm74, %v90
  %99 = vrot.lane.b32.xlu0 %v70, 96
  %v100 = vpop.permute.xlu0 %99
  %101 = vrot.lane.b32.xlu0 %v71, 96
  %v102 = vpop.permute.xlu0 %101
  %103 = vrot.lane.b32.xlu0 %v72, 96
  %v104 = vpop.permute.xlu0 %103
  %105 = vrot.lane.b32.xlu0 %v73, 96
  %v106 = vpop.permute.xlu0 %105
  %111 = vst.msk [vmem:[%s5] sm:$0xf] %vm74, %v100
  %112 = vst.msk [vmem:[%s5 + $0x4] sm:$0xf] %vm74, %v102
  %113 = vst.msk [vmem:[%s5 + $0x8] sm:$0xf] %vm74, %v104
  %114 = vst.msk [vmem:[%s5 + $0xc] sm:$0xf] %vm74, %v106
  // Predicated region
  $region14: #{tpu_custom_call.1} parent=0 // pred_check
    _
  $region15: #{tpu_custom_call.1} parent=0 // pred_check_branch
    %116 = sbr.rel (0) target = $region17
  $region16: #{tpu_custom_call.1} parent=0 // pred_region
    _
  $region17: #{tpu_custom_call.1} parent=0 // pred_fallthru
    _
  // Predicated region
  $region18: #{tpu_custom_call.1} parent=0 // pred_check
    _
  $region19: #{tpu_custom_call.1} parent=0 // pred_check_branch
    %118 = sbr.rel (0) target = $region21
  $region20: #{tpu_custom_call.1} parent=0 // pred_region
    _
  $region21: #{tpu_custom_call.1} parent=0 // pred_fallthru
    _
  // Predicated region
  $region22: #{tpu_custom_call.1} parent=0 // pred_check
    _
  $region23: #{tpu_custom_call.1} parent=0 // pred_check_branch
    %120 = sbr.rel (0) target = $region25
  $region24: #{tpu_custom_call.1} parent=0 // pred_region
    _
  $region25: #{tpu_custom_call.1} parent=0 // pred_fallthru
    _
  // Predicated region
  $region26: #{tpu_custom_call.1} parent=0 // pred_check
    _
  $region27: #{tpu_custom_call.1} parent=0 // pred_check_branch
    %122 = sbr.rel (0) target = $region29
  $region28: #{tpu_custom_call.1} parent=0 // pred_region
    _
  $region29: #{tpu_custom_call.1} parent=0 // pred_fallthru
    _
  // Predicated region
  $region30: #{tpu_custom_call.1} parent=0 // pred_check
    _
  $region31: #{tpu_custom_call.1} parent=0 // pred_check_branch
    %124 = sbr.rel (0) target = $region33
  $region32: #{tpu_custom_call.1} parent=0 // pred_region
    _
  $region33: #{tpu_custom_call.1} parent=0 // pred_fallthru
    _
  // Predicated region
  $region34: #{tpu_custom_call.1} parent=0 // pred_check
    _
  $region35: #{tpu_custom_call.1} parent=0 // pred_check_branch
    %126 = sbr.rel (0) target = $region37
  $region36: #{tpu_custom_call.1} parent=0 // pred_region
    _
  $region37: #{tpu_custom_call.1} parent=0 // pred_fallthru
    _

</llo_original>
